<compile_context>
chip_gen: v5e
topology: v5e:2x2
jax: 0.10.0
libtpu: 0.0.40
codegen_flags: <defaults>
</compile_context>

<pallas_src>
import math

import jax
import jax.numpy as jnp
from jax.experimental import pallas as pl
from jax.experimental.pallas import tpu as pltpu

# ---- static configuration (mirrors the PyTorch script) ---------------------
B, H, SQ, D = 1, 128, 1, 64
BH = B * H * SQ                       # 128 per-head score rows
LANES = 128
ROWS = (BH * D) // LANES              # 64 -> lane-dense (64, 128) layout
INV_SCALE_FACTOR = math.sqrt(1.0 / 128.0)
DROPOUT_P = 0.5


def _dropout_matmul_kernel(scale_ref, v_ref, o_ref):
    # softmax over a size-1 axis == 1.0, so
    #   output = dropout(softmax(q@k^T / s)) @ v == keep_scale * v
    # scale_ref already holds keep_mask * 1/(1-p) broadcast per head into the
    # lane-dense (ROWS, 128) layout -> one full-width VPU multiply + full vst.
    o_ref[...] = scale_ref[...] * v_ref[...]


def model_forward(query, key, value,
                  inv_scale_factor=INV_SCALE_FACTOR,
                  dropout_p=DROPOUT_P,
                  seed=0):
    """query/key/value: (B, H, 1, D) float32 arrays (PyTorch layout)."""
    # q, k and the scale factor drop out exactly: softmax over the size-1 last
    # dim is 1.0 regardless of the scores.  (NaN/Inf in q/k would therefore
    # not propagate here, unlike PyTorch's literal graph.)
    del query, key, inv_scale_factor

    # Per-head train-mode dropout mask, pre-scaled by 1/(1-p).
    keep = jax.random.bernoulli(
        jax.random.PRNGKey(seed), p=1.0 - dropout_p, shape=(BH,))
    scale_head = jnp.where(keep, 1.0 / (1.0 - dropout_p), 0.0).astype(jnp.float32)

    # Lane-dense packing: row-major flatten of (B, H, 1, D) -> (ROWS, 128).
    # Element (r, j) belongs to head 2r + j // 64; jnp.repeat reproduces that
    # layout for the per-head scale.
    v2 = value.reshape(ROWS, LANES)
    scale2 = jnp.repeat(scale_head, D).reshape(ROWS, LANES)

    out2 = pl.pallas_call(
        _dropout_matmul_kernel,
        out_shape=jax.ShapeDtypeStruct((ROWS, LANES), jnp.float32),
        in_specs=[
            pl.BlockSpec(memory_space=pltpu.MemorySpace.VMEM),   # scale
            pl.BlockSpec(memory_space=pltpu.MemorySpace.VMEM),   # value
        ],
        out_specs=pl.BlockSpec(memory_space=pltpu.MemorySpace.VMEM),
    )(scale2, v2)

    return out2.reshape(B, H, SQ, D)


if __name__ == "__main__":
    rng = jax.random.PRNGKey(0)
    kq, kk, kv = jax.random.split(rng, 3)
    query = jax.random.normal(kq, (B, H, SQ, D), dtype=jnp.float32)
    key = jax.random.normal(kk, (B, H, SQ, D), dtype=jnp.float32)
    value = jax.random.normal(kv, (B, H, SQ, D), dtype=jnp.float32)

    out = model_forward(query, key, value, seed=0)
    jax.block_until_ready(out)
    assert out.shape == (B, H, SQ, D) and out.dtype == jnp.float32
    # Sanity: every head's output row is either 0 or 2 * value (p = 0.5).
    ratio = out.reshape(BH, D) / value.reshape(BH, D)
    ok = jnp.all(jnp.logical_or(jnp.abs(ratio) < 1e-6, jnp.abs(ratio - 2.0) < 1e-6))
    assert bool(ok)
    print("KERNEL_OK")
</pallas_src>

<mosaic_0001>
module attributes {stable_mosaic.version = 11 : i64} {
  func.func @_dropout_matmul_kernel(%arg0: memref<64x128xf32, #tpu.memory_space<vmem>>, %arg1: memref<64x128xf32, #tpu.memory_space<vmem>>, %arg2: memref<64x128xf32, #tpu.memory_space<vmem>>) attributes {dimension_semantics = [], scalar_prefetch = 0 : i64, scratch_operands = 0 : i64, tpu.core_type = #tpu.core_type<tc>} {
    %c0 = arith.constant 0 : index
    %c0_0 = arith.constant 0 : index
    %0 = vector.load %arg0[%c0, %c0_0] : memref<64x128xf32, #tpu.memory_space<vmem>>, vector<64x128xf32>
    %c0_1 = arith.constant 0 : index
    %c0_2 = arith.constant 0 : index
    %1 = vector.load %arg1[%c0_1, %c0_2] : memref<64x128xf32, #tpu.memory_space<vmem>>, vector<64x128xf32>
    %2 = arith.mulf %0, %1 : vector<64x128xf32>
    %c0_3 = arith.constant 0 : index
    %c0_4 = arith.constant 0 : index
    %3 = vector.load %arg2[%c0_3, %c0_4] : memref<64x128xf32, #tpu.memory_space<vmem>>, vector<64x128xf32>
    tpu.vector_store %arg2[%c0_3, %c0_4], %2 {strides = array<i32>} : memref<64x128xf32, #tpu.memory_space<vmem>>, vector<64x128xf32>,
    return
  }
}

</mosaic_0001>

<llo_original>
// kernel: tpu_custom_call.1
$region0: #{tpu_custom_call.1}
  #allocation0 [shape = 'u32[]', space=smem, size = 0x4, offset = 0x4, fixed_abs, tag = 'smem constant byte address 0x4 - core index']
  #allocation1 [shape = 'u32[72,128]{1,0:T(1,128)}', space=vmem, size = 0x9000, scoped, tag = 'internal scratch']
  %s0 = inlined_call_operand.hbm [shape: f32[64,128], index: 0, kind: input, shape index: {}]
  %s1 = inlined_call_operand.hbm [shape: f32[64,128], index: 1, kind: input, shape index: {}]
  %s2 = inlined_call_operand.hbm [shape: f32[64,128], index: 2, kind: output, shape index: {}]
  %s3 = sld [smem:[#allocation0]]
  $region26: #{tpu_custom_call.1} parent=0
    _
  %s5 = ssub.s32 1, %s3
  %s6 = scalar_select 0, %s5, %s3
  $region1: #{tpu_custom_call.1} parent=0
    #allocation2 [shape = 'u8[32768]{0}', space=vmem, size = 0x8000, scoped, tag = 'input window, operand 0, single buffered']
    #allocation3 [shape = 's32[1]{0}', space=sflag, size = 0x4, scoped, tag = 'scoped memory for tpu_custom_call.1']
    #allocation4 [shape = 's32[1]{0}', space=sflag, size = 0x4, scoped, tag = 'scoped memory for tpu_custom_call.1']
    #allocation5 [shape = 'u8[32768]{0}', space=vmem, size = 0x8000, scoped, tag = 'input window, operand 1, single buffered']
    #allocation6 [shape = 's32[1]{0}', space=sflag, size = 0x4, scoped, tag = 'scoped memory for tpu_custom_call.1']
    #allocation7 [shape = 'u8[32768]{0}', space=vmem, size = 0x8000, scoped, tag = 'output window, operand 0, single buffered']
    %7 = vsyncpa [#allocation3], 0
    %8 = vsyncpa [#allocation6], 0
    %9 = vsyncpa [#allocation4], 0
    // Predicated region
    $region2: #{tpu_custom_call.1} parent=1 // pred_check
      _
    $region3: #{tpu_custom_call.1} parent=1 // pred_check_branch
      %11 = sbr.rel (0) target = $region5
    $region4: #{tpu_custom_call.1} parent=1 // pred_region
      %13 = vsyncadd [#allocation3], 0
      %s14 = sshll.u32 %s0, 4
      %s15 = int_to_ptr.hbm [resolvable:$true] %s14
      %s16 = sshll.u32 [#allocation2], 4
      %s17 = int_to_ptr.vmem [resolvable:$true] %s16
      %22 = dma.hbm_to_vmem [thread:$0]  %s15, 1024, %s17, [#allocation3], 128, 128, 8
    $region5: #{tpu_custom_call.1} parent=1 // pred_fallthru
      _
    // Predicated region
    $region6: #{tpu_custom_call.1} parent=1 // pred_check
      _
    $region7: #{tpu_custom_call.1} parent=1 // pred_check_branch
      %24 = sbr.rel (0) target = $region9
    $region8: #{tpu_custom_call.1} parent=1 // pred_region
      %26 = vsyncadd [#allocation6], 0
      %s27 = sshll.u32 %s1, 4
      %s28 = int_to_ptr.hbm [resolvable:$true] %s27
      %s29 = sshll.u32 [#allocation5], 4
      %s30 = int_to_ptr.vmem [resolvable:$true] %s29
      %35 = dma.hbm_to_vmem [thread:$0]  %s28, 1024, %s30, [#allocation6], 128, 128, 8
    $region9: #{tpu_custom_call.1} parent=1 // pred_fallthru
      _
    // Predicated region
    $region10: #{tpu_custom_call.1} parent=1 // pred_check
      _
    $region11: #{tpu_custom_call.1} parent=1 // pred_check_branch
      %37 = sbr.rel (0) target = $region13
    $region12: #{tpu_custom_call.1} parent=1 // pred_region
      %39 = dma.done [#allocation3], 1024
    $region13: #{tpu_custom_call.1} parent=1 // pred_fallthru
      _
    // Predicated region
    $region14: #{tpu_custom_call.1} parent=1 // pred_check
      _
    $region15: #{tpu_custom_call.1} parent=1 // pred_check_branch
      %41 = sbr.rel (0) target = $region17
    $region16: #{tpu_custom_call.1} parent=1 // pred_region
      %43 = dma.done [#allocation6], 1024
    $region17: #{tpu_custom_call.1} parent=1 // pred_fallthru
      _
    %v44 = vld [vmem:[#allocation2] sm:$0xff]
    %v45 = vld [vmem:[#allocation2 + $0x8] sm:$0xff]
    %v46 = vld [vmem:[#allocation2 + $0x10] sm:$0xff]
    %v47 = vld [vmem:[#allocation2 + $0x18] sm:$0xff]
    %v48 = vld [vmem:[#allocation2 + $0x20] sm:$0xff]
    %v49 = vld [vmem:[#allocation2 + $0x28] sm:$0xff]
    %v50 = vld [vmem:[#allocation2 + $0x30] sm:$0xff]
    %v51 = vld [vmem:[#allocation2 + $0x38] sm:$0xff]
    %v52 = vld [vmem:[#allocation5] sm:$0xff]
    %v53 = vld [vmem:[#allocation5 + $0x8] sm:$0xff]
    %v54 = vld [vmem:[#allocation5 + $0x10] sm:$0xff]
    %v55 = vld [vmem:[#allocation5 + $0x18] sm:$0xff]
    %v56 = vld [vmem:[#allocation5 + $0x20] sm:$0xff]
    %v57 = vld [vmem:[#allocation5 + $0x28] sm:$0xff]
    %v58 = vld [vmem:[#allocation5 + $0x30] sm:$0xff]
    %v59 = vld [vmem:[#allocation5 + $0x38] sm:$0xff]
    %v60 = vmul.f32 %v44, %v52
    %v61 = vmul.f32 %v45, %v53
    %v62 = vmul.f32 %v46, %v54
    %v63 = vmul.f32 %v47, %v55
    %v64 = vmul.f32 %v48, %v56
    %v65 = vmul.f32 %v49, %v57
    %v66 = vmul.f32 %v50, %v58
    %v67 = vmul.f32 %v51, %v59
    %68 = vst [vmem:[#allocation7] sm:$0xff] %v60
    %69 = vst [vmem:[#allocation7 + $0x8] sm:$0xff] %v61
    %70 = vst [vmem:[#allocation7 + $0x10] sm:$0xff] %v62
    %71 = vst [vmem:[#allocation7 + $0x18] sm:$0xff] %v63
    %72 = vst [vmem:[#allocation7 + $0x20] sm:$0xff] %v64
    %73 = vst [vmem:[#allocation7 + $0x28] sm:$0xff] %v65
    %74 = vst [vmem:[#allocation7 + $0x30] sm:$0xff] %v66
    %75 = vst [vmem:[#allocation7 + $0x38] sm:$0xff] %v67
    // Predicated region
    $region18: #{tpu_custom_call.1} parent=1 // pred_check
      _
    $region19: #{tpu_custom_call.1} parent=1 // pred_check_branch
      %77 = sbr.rel (0) target = $region21
    $region20: #{tpu_custom_call.1} parent=1 // pred_region
      %79 = vsyncadd [#allocation4], 0
      %s80 = sshll.u32 [#allocation7], 4
      %s81 = int_to_ptr.vmem [resolvable:$true] %s80
      %s82 = sshll.u32 %s2, 4
      %s83 = int_to_ptr.hbm [resolvable:$true] %s82
      %88 = dma.vmem_to_hbm [thread:$0]  %s81, 1024, %s83, [#allocation4], 128, 128, 8
    $region21: #{tpu_custom_call.1} parent=1 // pred_fallthru
      _
    // Predicated region
    $region22: #{tpu_custom_call.1} parent=1 // pred_check
      _
    $region23: #{tpu_custom_call.1} parent=1 // pred_check_branch
      %90 = sbr.rel (0) target = $region25
    $region24: #{tpu_custom_call.1} parent=1 // pred_region
      %92 = dma.done [#allocation4], 1024
    $region25: #{tpu_custom_call.1} parent=1 // pred_fallthru
      _
    %93 = vsyncpa [#allocation3], 1
    %94 = vsyncpa [#allocation6], 1
    %95 = vsyncpa [#allocation4], 1

</llo_original>
